<compile_context>
chip_gen: v7x
topology: tpu7x:2x2x1
jax: 0.10.0
libtpu: 0.0.40
codegen_flags: <defaults>
</compile_context>

<pallas_src>
import functools

import jax
import jax.numpy as jnp
from jax.experimental import pallas as pl
from jax.experimental.pallas import tpu as pltpu

LANES = 128


# ----------------------------------------------------------------------------
# 1) Scalar path: one packed SMEM operand, purely scalar bundles.
# ----------------------------------------------------------------------------
def quadfun_scalar_kernel(p_ref, o_ref):
    # p_ref: SMEM (4,) f32 = [w0, w1, b, x];  o_ref: SMEM (1,) f32
    w0 = p_ref[0]
    w1 = p_ref[1]
    b = p_ref[2]
    x = p_ref[3]
    # fc1(fc2(x)) = w0*x + w1*x**2 + b, Horner form (2 mul + 2 add).
    o_ref[0] = x * (w0 + w1 * x) + b


@jax.jit
def net_forward(x_scalar, weight, bias):
    """Scalar input () -> output (1,), mirroring Net.forward."""
    params = jnp.stack(
        [weight[0, 0], weight[0, 1], bias[0],
         jnp.asarray(x_scalar, jnp.float32)]
    )
    return pl.pallas_call(
        quadfun_scalar_kernel,
        out_shape=jax.ShapeDtypeStruct((1,), jnp.float32),
        in_specs=[pl.BlockSpec(memory_space=pltpu.MemorySpace.SMEM)],
        out_specs=pl.BlockSpec(memory_space=pltpu.MemorySpace.SMEM),
    )(params)


# ----------------------------------------------------------------------------
# 2) Batched path: VPU elementwise kernel over (rows, 128) lane-dense tiles.
# ----------------------------------------------------------------------------
def quadfun_batched_kernel(p_ref, x_ref, o_ref):
    # p_ref: SMEM (3,) f32 = [w0, w1, b];  x_ref/o_ref: VMEM (tile_rows, 128)
    x = x_ref[...]
    o_ref[...] = x * (p_ref[0] + p_ref[1] * x) + p_ref[2]


@functools.partial(jax.jit, static_argnames=("tile_rows",))
def net_forward_batched(xs, weight, bias, *, tile_rows=512):
    """Vectorized forward over many scalar inputs: xs (N,) f32 -> (N,) f32."""
    n = xs.shape[0]
    # Pad to a lane-dense (rows, 128) slab; rows multiple of 8 and of the tile.
    rows = max(8, -(-n // LANES))
    rows = -(-rows // 8) * 8
    tr = min(tile_rows, rows)
    rows = -(-rows // tr) * tr
    x2 = (
        jnp.zeros((rows * LANES,), jnp.float32)
        .at[:n].set(xs.astype(jnp.float32))
        .reshape(rows, LANES)
    )
    params = jnp.stack([weight[0, 0], weight[0, 1], bias[0]])
    out = pl.pallas_call(
        quadfun_batched_kernel,
        out_shape=jax.ShapeDtypeStruct((rows, LANES), jnp.float32),
        grid=(rows // tr,),
        in_specs=[
            pl.BlockSpec(memory_space=pltpu.MemorySpace.SMEM),  # packed params
            pl.BlockSpec((tr, LANES), lambda i: (i, 0)),        # x tile (VMEM)
        ],
        out_specs=pl.BlockSpec((tr, LANES), lambda i: (i, 0)),
        compiler_params=pltpu.CompilerParams(
            dimension_semantics=("parallel",)
        ),
    )(params, x2)
    return out.reshape(-1)[:n]


if __name__ == "__main__":
    kw, kb, kx, kxs = jax.random.split(jax.random.PRNGKey(0), 4)
    # Mimic PyTorch Linear(2, 1) default init: U(-1/sqrt(2), 1/sqrt(2)).
    bound = 1.0 / jnp.sqrt(2.0)
    weight = jax.random.uniform(kw, (1, 2), jnp.float32, -bound, bound)
    bias = jax.random.uniform(kb, (1,), jnp.float32, -bound, bound)

    # --- Scalar path: exact module semantics (scalar in, shape-(1,) out). ---
    x = jax.random.normal(kx, (), jnp.float32)
    y = net_forward(x, weight, bias)
    jax.block_until_ready(y)
    ref = weight[0, 0] * x + weight[0, 1] * x * x + bias[0]
    assert y.shape == (1,)
    assert jnp.allclose(y[0], ref, atol=1e-5, rtol=1e-5), (y, ref)

    # --- Batched path: small batch exercising the grid + pipelining. ---
    xs = jax.random.normal(kxs, (2048,), jnp.float32)
    ys = net_forward_batched(xs, weight, bias, tile_rows=8)
    jax.block_until_ready(ys)
    refs = weight[0, 0] * xs + weight[0, 1] * xs * xs + bias[0]
    assert ys.shape == xs.shape
    assert jnp.allclose(ys, refs, atol=1e-5, rtol=1e-5)

    print("KERNEL_OK")
</pallas_src>

<mosaic_0001>
module attributes {stable_mosaic.version = 11 : i64} {
  func.func @quadfun_scalar_kernel(%arg0: memref<4xf32, #tpu.memory_space<smem>>, %arg1: memref<1xf32, #tpu.memory_space<smem>>) attributes {dimension_semantics = [], scalar_prefetch = 0 : i64, scratch_operands = 0 : i64, tpu.core_type = #tpu.core_type<tc>} {
    %c0 = arith.constant 0 : index
    %0 = memref.load %arg0[%c0] : memref<4xf32, #tpu.memory_space<smem>>
    %c1 = arith.constant 1 : index
    %1 = memref.load %arg0[%c1] : memref<4xf32, #tpu.memory_space<smem>>
    %c2 = arith.constant 2 : index
    %2 = memref.load %arg0[%c2] : memref<4xf32, #tpu.memory_space<smem>>
    %c3 = arith.constant 3 : index
    %3 = memref.load %arg0[%c3] : memref<4xf32, #tpu.memory_space<smem>>
    %4 = arith.mulf %1, %3 : f32
    %5 = arith.addf %0, %4 : f32
    %6 = arith.mulf %3, %5 : f32
    %7 = arith.addf %6, %2 : f32
    %c0_0 = arith.constant 0 : index
    %8 = memref.load %arg1[%c0_0] : memref<1xf32, #tpu.memory_space<smem>>
    memref.store %7, %arg1[%c0_0] : memref<1xf32, #tpu.memory_space<smem>>
    return
  }
}

</mosaic_0001>

<llo_original>
// kernel: net_forward.1
$region0: #{net_forward.1}
  #allocation0 [shape = 'u32[]', space=smem, size = 0x4, offset = 0x4, fixed_abs, tag = 'smem constant byte address 0x4 - core index']
  #allocation1 [shape = 'u32[144,128]{1,0:T(1,128)}', space=vmem, size = 0x12000, scoped, tag = 'internal scratch']
  %s0 = inlined_call_operand.vmem [shape: f32[4], index: 0, kind: input, shape index: {}]
  %s1 = inlined_call_operand.hbm [shape: f32[1], index: 1, kind: output, shape index: {}]
  %s2 = sld [smem:[#allocation0]]
  $region18: #{net_forward.1} parent=0
    _
  %s4 = ssub.s32 1, %s2
  %s5 = scalar_select 0, %s4, %s2
  $region1: #{net_forward.1} parent=0
    #allocation2 [shape = 'u8[512]{0}', space=smem, size = 0x200, scoped, tag = 'input window, operand 0, single buffered']
    #allocation3 [shape = 's32[1]{0}', space=sflag, size = 0x4, scoped, tag = 'scoped memory for net_forward.1']
    #allocation4 [shape = 's32[1]{0}', space=sflag, size = 0x4, scoped, tag = 'scoped memory for net_forward.1']
    #allocation5 [shape = 'u8[512]{0}', space=smem, size = 0x200, scoped, tag = 'output window, operand 0, single buffered']
    %6 = vsyncpa [#allocation4], 0
    %7 = vsyncpa [#allocation3], 0
    // Predicated region
    $region2: #{net_forward.1} parent=1 // pred_check
      _
    $region3: #{net_forward.1} parent=1 // pred_check_branch
      %9 = sbr.rel (0) target = $region5
    $region4: #{net_forward.1} parent=1 // pred_region
      %s11 = ssub.s32 16, 16
      %12 = vsyncadd [#allocation4], %s11
      %s14 = sshll.u32 %s0, 4
      %s15 = int_to_ptr.vmem [resolvable:$true] %s14
      %17 = dma.vmem_to_smem %s15, 16, [#allocation2], [#allocation4]
    $region5: #{net_forward.1} parent=1 // pred_fallthru
      _
    // Predicated region
    $region6: #{net_forward.1} parent=1 // pred_check
      _
    $region7: #{net_forward.1} parent=1 // pred_check_branch
      %19 = sbr.rel (0) target = $region9
    $region8: #{net_forward.1} parent=1 // pred_region
      %20 = dma.done [#allocation4], 16
    $region9: #{net_forward.1} parent=1 // pred_fallthru
      _
    %21 = sfence
    %s22 = sld [smem:[#allocation2]]
    %s23 = sld [smem:[#allocation2 + $0x1]]
    %s24 = sld [smem:[#allocation2 + $0x2]]
    %s25 = sld [smem:[#allocation2 + $0x3]]
    %s26 = smul.f32 %s23, %s25
    %s27 = sadd.f32 %s22, %s26
    %s28 = smul.f32 %s25, %s27
    %s29 = sadd.f32 %s28, %s24
    %s30 = scalar_lea.smem [#allocation5], 0
    %31 = sst [smem:[%s30]] %s29
    // Predicated region
    $region10: #{net_forward.1} parent=1 // pred_check
      _
    $region11: #{net_forward.1} parent=1 // pred_check_branch
      %33 = sbr.rel (0) target = $region13
    $region12: #{net_forward.1} parent=1 // pred_region
      %s35 = ssub.s32 16, 16
      %36 = vsyncadd [#allocation3], %s35
      %39 = dma.smem_to_hbm [#allocation5], 16, %s1, [#allocation3]
    $region13: #{net_forward.1} parent=1 // pred_fallthru
      _
    // Predicated region
    $region14: #{net_forward.1} parent=1 // pred_check
      _
    $region15: #{net_forward.1} parent=1 // pred_check_branch
      %41 = sbr.rel (0) target = $region17
    $region16: #{net_forward.1} parent=1 // pred_region
      %42 = dma.done [#allocation3], 16
    $region17: #{net_forward.1} parent=1 // pred_fallthru
      _
    %43 = sfence
    %44 = vsyncpa [#allocation3], 1
    %45 = vsyncpa [#allocation4], 1

</llo_original>
